<compile_context>
chip_gen: v6e
topology: v6e:2x2x1
jax: 0.10.0
libtpu: 0.0.40
codegen_flags: <defaults>
</compile_context>

<pallas_src>
import math
from functools import partial

import numpy as np
import jax
import jax.numpy as jnp
from jax import lax
from jax.experimental import pallas as pl
from jax.experimental.pallas import tpu as pltpu

F32 = jnp.float32
BF16 = jnp.bfloat16
TOKEN_SELF_ATTN_VALUE = -50000.0
MASKED_VALUE = -float(np.finfo(np.float32).max)
LN_EPS = 1e-12  # ESM1bLayerNorm-style epsilon


# --------------------------------------------------------------------------------------
# Small helpers
# --------------------------------------------------------------------------------------

def _round_up(n, m):
    return ((n + m - 1) // m) * m


def _row_tiles(M, cap=256):
    """Pick a row tile (multiple of 8) and the padded row count it divides."""
    tm = min(cap, _round_up(M, 8))
    M_pad = _round_up(M, tm)
    return M_pad, tm


def _pick_chunk_batch(C, S, T, D, with_p, cap=64):
    """Largest divisor of C (<= cap) such that double-buffered blocks stay well under VMEM."""
    per_chunk = S * D + 2 * T * D + S * D + S + 3 * (S + T)   # q, k, v, bo, lse, masks
    if with_p:
        per_chunk += S * T
    per_chunk_bytes = 4 * per_chunk
    budget = 8 * 1024 * 1024                                   # ~8 MiB double-buffered
    max_by_vmem = max(1, budget // (2 * per_chunk_bytes))
    cap = max(1, min(cap, max_by_vmem, C))
    for d in range(cap, 0, -1):
        if C % d == 0:
            return d
    return 1


def _erf(x):
    # Abramowitz & Stegun 7.1.26 polynomial (max abs error 1.5e-7 ~= f32 exactness);
    # avoids relying on a lax.erf lowering inside Mosaic.
    a1, a2, a3, a4, a5 = (0.254829592, -0.284496736, 1.421413741,
                          -1.453152027, 1.061405429)
    p = 0.3275911
    ax = jnp.abs(x)
    t = 1.0 / (1.0 + p * ax)
    poly = ((((a5 * t + a4) * t + a3) * t + a2) * t + a1) * t
    y = 1.0 - poly * jnp.exp(-ax * ax)
    return jnp.where(x >= 0, y, -y)


def _gelu_exact(x):
    return 0.5 * x * (1.0 + _erf(x * (1.0 / math.sqrt(2.0))))


# --------------------------------------------------------------------------------------
# Pallas kernels: dense (row-tiled, bf16 MXU, f32 accumulation)
# --------------------------------------------------------------------------------------

def _matmul_kernel(a_ref, b_ref, o_ref):
    o_ref[...] = jnp.dot(a_ref[...], b_ref[...], preferred_element_type=jnp.float32)


def pl_matmul(a, b):
    """Row-tiled (M, K) @ (K, N) in f32 (used for the LSH hashing rotations)."""
    M, K = a.shape
    N = b.shape[1]
    M_pad, tm = _row_tiles(M, cap=512)
    a_p = jnp.pad(a.astype(F32), ((0, M_pad - M), (0, 0)))
    out = pl.pallas_call(
        _matmul_kernel,
        grid=(M_pad // tm,),
        in_specs=[pl.BlockSpec((tm, K), lambda i: (i, 0)),
                  pl.BlockSpec((K, N), lambda i: (0, 0))],
        out_specs=pl.BlockSpec((tm, N), lambda i: (i, 0)),
        out_shape=jax.ShapeDtypeStruct((M_pad, N), F32),
        compiler_params=pltpu.CompilerParams(dimension_semantics=("parallel",)),
    )(a_p, b.astype(F32))
    return out[:M]


def _ln_proj_kernel(x_ref, g_ref, b_ref, wqk_ref, wv_ref, qk_ref, v_ref, *, eps):
    x = x_ref[...]
    mu = jnp.mean(x, axis=-1, keepdims=True)
    var = jnp.mean((x - mu) ** 2, axis=-1, keepdims=True)
    xn = (x - mu) / jnp.sqrt(var + eps) * g_ref[...] + b_ref[...]
    xb = xn.astype(BF16)
    qk_ref[...] = jnp.dot(xb, wqk_ref[...], preferred_element_type=jnp.float32)
    v_ref[...] = jnp.dot(xb, wv_ref[...], preferred_element_type=jnp.float32)


def pl_ln_proj(x2d, gamma, beta, w_qk_t, w_v_t, eps=LN_EPS):
    """Fused LayerNorm + toqk/tov projections (two outputs, one HBM pass of x)."""
    M, E = x2d.shape
    N = w_qk_t.shape[1]
    M_pad, tm = _row_tiles(M)
    x_p = jnp.pad(x2d.astype(F32), ((0, M_pad - M), (0, 0)))
    qk, v = pl.pallas_call(
        partial(_ln_proj_kernel, eps=eps),
        grid=(M_pad // tm,),
        in_specs=[pl.BlockSpec((tm, E), lambda i: (i, 0)),
                  pl.BlockSpec((1, E), lambda i: (0, 0)),
                  pl.BlockSpec((1, E), lambda i: (0, 0)),
                  pl.BlockSpec((E, N), lambda i: (0, 0)),
                  pl.BlockSpec((E, N), lambda i: (0, 0))],
        out_specs=[pl.BlockSpec((tm, N), lambda i: (i, 0)),
                   pl.BlockSpec((tm, N), lambda i: (i, 0))],
        out_shape=(jax.ShapeDtypeStruct((M_pad, N), F32),
                   jax.ShapeDtypeStruct((M_pad, N), F32)),
        compiler_params=pltpu.CompilerParams(dimension_semantics=("parallel",)),
    )(x_p, gamma.reshape(1, E).astype(F32), beta.reshape(1, E).astype(F32),
      w_qk_t.astype(BF16), w_v_t.astype(BF16))
    return qk[:M], v[:M]


def _ffn_kernel(x_ref, g_ref, b_ref, w1_ref, b1_ref, w2_ref, b2_ref, o_ref, *, eps):
    x = x_ref[...]
    mu = jnp.mean(x, axis=-1, keepdims=True)
    var = jnp.mean((x - mu) ** 2, axis=-1, keepdims=True)
    xn = (x - mu) / jnp.sqrt(var + eps) * g_ref[...] + b_ref[...]
    h = jnp.dot(xn.astype(BF16), w1_ref[...],
                preferred_element_type=jnp.float32) + b1_ref[...]
    h = _gelu_exact(h)
    y = jnp.dot(h.astype(BF16), w2_ref[...],
                preferred_element_type=jnp.float32) + b2_ref[...]
    o_ref[...] = x + y


def pl_ffn(x2d, gamma, beta, w1_t, b1, w2_t, b2, eps=LN_EPS):
    """Fused FFN residual block: LN -> W1 -> GELU -> W2 -> + residual."""
    M, E = x2d.shape
    Fh = w1_t.shape[1]
    M_pad, tm = _row_tiles(M)
    x_p = jnp.pad(x2d.astype(F32), ((0, M_pad - M), (0, 0)))
    out = pl.pallas_call(
        partial(_ffn_kernel, eps=eps),
        grid=(M_pad // tm,),
        in_specs=[pl.BlockSpec((tm, E), lambda i: (i, 0)),
                  pl.BlockSpec((1, E), lambda i: (0, 0)),
                  pl.BlockSpec((1, E), lambda i: (0, 0)),
                  pl.BlockSpec((E, Fh), lambda i: (0, 0)),
                  pl.BlockSpec((1, Fh), lambda i: (0, 0)),
                  pl.BlockSpec((Fh, E), lambda i: (0, 0)),
                  pl.BlockSpec((1, E), lambda i: (0, 0))],
        out_specs=pl.BlockSpec((tm, E), lambda i: (i, 0)),
        out_shape=jax.ShapeDtypeStruct((M_pad, E), F32),
        compiler_params=pltpu.CompilerParams(dimension_semantics=("parallel",)),
    )(x_p, gamma.reshape(1, E).astype(F32), beta.reshape(1, E).astype(F32),
      w1_t.astype(BF16), b1.reshape(1, Fh).astype(F32),
      w2_t.astype(BF16), b2.reshape(1, E).astype(F32))
    return out[:M]


# --------------------------------------------------------------------------------------
# Pallas kernel: LSH chunked attention core (chunk-batched)
# --------------------------------------------------------------------------------------

def _lsh_chunk_body(bq_ref, bk_ref, bv_ref, mq_ref, mkv_ref, qt_ref, kvt_ref,
                    qb_ref, kvb_ref, lse_ref, bo_ref, p_ref, *, scale, feat_slices):
    q = bq_ref[0]          # (Cb, S, D)
    k = bk_ref[0]          # (Cb, T, D)  keys already L2-normalized in the wrapper
    v = bv_ref[0]          # (Cb, T, D)

    dots = None
    for (s0, s1) in feat_slices:   # static feature slices (reference's chunked-dot quirk)
        part = lax.dot_general(q[:, :, s0:s1], k[:, :, s0:s1],
                               (((2,), (2,)), ((0,), (0,))),
                               preferred_element_type=jnp.float32)
        dots = part if dots is None else dots + part
    dots = dots * scale            # (Cb, S, T)

    mq = mq_ref[0]                 # (Cb, S, 1)
    mkv = mkv_ref[0]               # (Cb, 1, T)
    pad0 = (mq * mkv) == 0.0
    bucket_diff = qb_ref[0] != kvb_ref[0]
    self_m = qt_ref[0] == kvt_ref[0]

    # Reference mask order (pad -> self -> bucket) folded into two selects:
    # bucket mismatch wins with MASKED_VALUE; self wins over padding with SELF value.
    dots = jnp.where(jnp.logical_or(bucket_diff, pad0), MASKED_VALUE, dots)
    dots = jnp.where(jnp.logical_and(self_m, jnp.logical_not(bucket_diff)),
                     TOKEN_SELF_ATTN_VALUE, dots)

    mx = jnp.max(dots, axis=-1, keepdims=True)
    lse = mx + jnp.log(jnp.sum(jnp.exp(dots - mx), axis=-1, keepdims=True))
    p = jnp.exp(dots - lse)

    lse_ref[...] = lse.reshape(lse_ref.shape)          # lane-dense (1,1,1,Cb*S) slab
    bo_ref[...] = lax.dot_general(p, v, (((2,), (1,)), ((0,), (0,))),
                                  preferred_element_type=jnp.float32
                                  ).reshape(bo_ref.shape)
    if p_ref is not None:
        p_ref[...] = p.reshape(p_ref.shape)


def _lsh_kernel_with_p(bq, bk, bv, mq, mkv, qt, kvt, qb, kvb, lse, bo, p_out,
                       *, scale, feat_slices):
    _lsh_chunk_body(bq, bk, bv, mq, mkv, qt, kvt, qb, kvb, lse, bo, p_out,
                    scale=scale, feat_slices=feat_slices)


def _lsh_kernel_no_p(bq, bk, bv, mq, mkv, qt, kvt, qb, kvb, lse, bo,
                     *, scale, feat_slices):
    _lsh_chunk_body(bq, bk, bv, mq, mkv, qt, kvt, qb, kvb, lse, bo, None,
                    scale=scale, feat_slices=feat_slices)


def lsh_chunk_attention(bq, bk, bv, mq, mkv, qt, kvt, qb, kvb, *, scale, feat_slices,
                        with_p):
    B, C, S, D = bq.shape
    T = bk.shape[2]
    Cb = _pick_chunk_batch(C, S, T, D, with_p)
    nC = C // Cb

    q_spec = pl.BlockSpec((1, Cb, S, D), lambda i, j: (i, j, 0, 0))
    kv_spec = pl.BlockSpec((1, Cb, T, D), lambda i, j: (i, j, 0, 0))
    qcol = pl.BlockSpec((1, Cb, S, 1), lambda i, j: (i, j, 0, 0))
    krow = pl.BlockSpec((1, Cb, 1, T), lambda i, j: (i, j, 0, 0))
    lse_spec = pl.BlockSpec((1, 1, 1, Cb * S), lambda i, j: (i, j, 0, 0))
    bo_spec = pl.BlockSpec((1, Cb, S, D), lambda i, j: (i, j, 0, 0))

    out_specs = [lse_spec, bo_spec]
    out_shape = [jax.ShapeDtypeStruct((B, nC, 1, Cb * S), F32),
                 jax.ShapeDtypeStruct((B, C, S, D), F32)]
    if with_p:
        out_specs.append(pl.BlockSpec((1, Cb, S, T), lambda i, j: (i, j, 0, 0)))
        out_shape.append(jax.ShapeDtypeStruct((B, C, S, T), F32))
        kernel = partial(_lsh_kernel_with_p, scale=scale, feat_slices=tuple(feat_slices))
    else:
        kernel = partial(_lsh_kernel_no_p, scale=scale, feat_slices=tuple(feat_slices))

    outs = pl.pallas_call(
        kernel,
        grid=(B, nC),
        in_specs=[q_spec, kv_spec, kv_spec, qcol, krow, qcol, krow, qcol, krow],
        out_specs=out_specs,
        out_shape=tuple(out_shape),
        compiler_params=pltpu.CompilerParams(
            dimension_semantics=("parallel", "parallel")),
    )(bq, bk, bv, mq, mkv, qt, kvt, qb, kvb)

    if with_p:
        lse, bo, p = outs
    else:
        (lse, bo), p = outs, None
    return lse, bo, p


# --------------------------------------------------------------------------------------
# LSH attention (glue around the Pallas chunk kernel)
# --------------------------------------------------------------------------------------

def lsh_attention(qk, v, input_mask, *, query_len, bucket_size, n_hashes,
                  dim_per_head, rot_key, return_attn, need_attn_map):
    batch_size, seqlen, dim = qk.shape
    assert seqlen % (bucket_size * 2) == 0
    n_buckets = seqlen // bucket_size

    # ----- hash_vectors (random rotations shared across batch, as in the reference) -----
    nb2 = n_buckets // 2
    rot = jax.random.normal(rot_key, (dim, n_hashes, nb2), dtype=F32)
    rotated = pl_matmul(qk.reshape(batch_size * seqlen, dim),
                        rot.reshape(dim, n_hashes * nb2))
    rotated = rotated.reshape(batch_size, seqlen, n_hashes, nb2).transpose(0, 2, 1, 3)
    rotated = jnp.concatenate([rotated, -rotated], axis=-1)
    buckets = jnp.argmax(rotated, axis=-1).astype(jnp.int32)          # (B, H, T)
    offsets = (jnp.arange(n_hashes, dtype=jnp.int32) * n_buckets).reshape(1, -1, 1)
    buckets = (buckets + offsets).reshape(batch_size, -1)

    total_hashes = n_hashes
    ticker = jnp.broadcast_to(
        jnp.arange(total_hashes * seqlen, dtype=jnp.int32)[None, :], buckets.shape)
    buckets_and_t = seqlen * buckets + ticker % seqlen
    sort_idx = jnp.argsort(buckets_and_t, axis=-1)
    sbuckets_and_t = jnp.take_along_axis(buckets_and_t, sort_idx, axis=-1)
    sticker = jnp.take_along_axis(ticker, sort_idx, axis=-1)
    undo_sort = jnp.argsort(sticker, axis=-1)
    st = sticker % seqlen

    # Hoisted key L2-normalization: F.normalize is row-wise so it commutes with the gather
    # and look_one_back; each key row is normalized once instead of twice per hash.
    row_norm = jnp.sqrt(jnp.sum(qk * qk, axis=-1, keepdims=True))
    k_full = qk / jnp.maximum(row_norm, 1e-12)

    sqk = jnp.take_along_axis(qk, st[:, :, None], axis=1)
    sk = jnp.take_along_axis(k_full, st[:, :, None], axis=1)
    sv = jnp.take_along_axis(v, st[:, :, None], axis=1)

    C = total_hashes * n_buckets
    S = bucket_size
    T2 = 2 * bucket_size
    bq_t = st.reshape(batch_size, C, S)
    bq = sqk.reshape(batch_size, C, S, dim)
    bk0 = sk.reshape(batch_size, C, S, dim)
    bv0 = sv.reshape(batch_size, C, S, dim)

    def look_one_back(x):
        x_extra = jnp.concatenate([x[:, -1:], x[:, :-1]], axis=1)
        return jnp.concatenate([x, x_extra], axis=2)

    bk = look_one_back(bk0)
    bv2 = look_one_back(bv0)
    bkv_t = look_one_back(bq_t)

    mq = jnp.take_along_axis(input_mask, st, axis=1).reshape(batch_size, C, S)
    mkv = look_one_back(mq)

    bq_buckets = (sbuckets_and_t // seqlen).reshape(batch_size, C, S)
    bkv_buckets = look_one_back(bq_buckets)

    # feature slices reproducing the reference's chunked-dot logic (return_attn branch)
    lens = bk.shape[-1] // dim_per_head
    tk = 64
    feat_slices = []
    for i in range(lens // tk):
        feat_slices.append((i * tk * dim_per_head, (i + 1) * tk * dim_per_head))
    if lens % tk != 0:
        neg = -(batch_size % tk) * dim_per_head        # len(bk) == batch_size in the ref
        start = 0 if neg == 0 else max(dim + neg, 0)
        feat_slices.append((start, dim))
    if not return_attn:
        feat_slices = [(0, dim)]

    lse, bo, p = lsh_chunk_attention(
        bq.astype(F32), bk.astype(F32), bv2.astype(F32),
        mq.reshape(batch_size, C, S, 1).astype(F32),
        mkv.reshape(batch_size, C, 1, T2).astype(F32),
        bq_t.reshape(batch_size, C, S, 1).astype(jnp.int32),
        bkv_t.reshape(batch_size, C, 1, T2).astype(jnp.int32),
        bq_buckets.reshape(batch_size, C, S, 1).astype(jnp.int32),
        bkv_buckets.reshape(batch_size, C, 1, T2).astype(jnp.int32),
        scale=float(dim) ** (-0.5), feat_slices=feat_slices, with_p=need_attn_map)

    so = bo.reshape(batch_size, -1, dim)
    slogits = lse.reshape(batch_size, -1)
    o = jnp.take_along_axis(so, undo_sort[:, :, None], axis=1)
    logits = jnp.take_along_axis(slogits, undo_sort, axis=1)
    o = o.reshape(batch_size, total_hashes, seqlen, dim)
    logits = logits.reshape(batch_size, total_hashes, seqlen, 1)

    # query_len == seqlen in GRNTransformer
    lse_h = jax.scipy.special.logsumexp(logits, axis=1, keepdims=True)
    probs = jnp.exp(logits - lse_h)
    out = jnp.sum(o * probs, axis=1)

    attn = jnp.zeros((0,), F32)
    if need_attn_map:
        # TODO(synk): dense O(seqlen^2) scatter kept in JAX glue; for long sequences this
        # should be streamed / accumulated inside the kernel.
        attn_unsort = (bq_t * seqlen)[:, :, :, None] + bkv_t[:, :, None, :]
        attn_unsort = attn_unsort.reshape(batch_size * total_hashes, -1)
        dots_flat = p.reshape(batch_size * total_hashes, -1)
        rows = jnp.arange(batch_size * total_hashes)[:, None]
        unsorted_dots = jnp.zeros((batch_size * total_hashes, seqlen * seqlen), F32)
        unsorted_dots = unsorted_dots.at[rows, attn_unsort].add(dots_flat)
        unsorted_dots = unsorted_dots.reshape(batch_size, total_hashes, seqlen, seqlen)
        attn = jnp.sum(unsorted_dots[:, :, :query_len, :] * probs, axis=1)
    return out, attn, buckets


def lsh_self_attention(x, p, input_mask, *, heads, bucket_size, n_hashes, rot_key,
                       return_attn, need_attn_map):
    b, t, e = x.shape
    h = heads
    dh = e // h
    # Fused LayerNorm + toqk/tov projections (bias=False in the reference).
    qk2d, v2d = pl_ln_proj(x.reshape(b * t, e), p["ln_g"], p["ln_b"],
                           p["w_qk_t"], p["w_v_t"])
    qk = qk2d.reshape(b, t, e)
    v = v2d.reshape(b, t, e)

    def merge_heads(z):
        return z.reshape(b, t, h, dh).transpose(0, 2, 1, 3)

    qk = merge_heads(qk).transpose(1, 2, 0, 3).reshape(h, t, b * dh)
    v = merge_heads(v).transpose(1, 2, 0, 3).reshape(h, t, b * dh)
    mask_ht = jnp.broadcast_to(input_mask[None, :], (h, t)).astype(F32)

    out, attn, _buckets = lsh_attention(
        qk, v, mask_ht, query_len=t, bucket_size=bucket_size, n_hashes=n_hashes,
        dim_per_head=e // h, rot_key=rot_key, return_attn=return_attn,
        need_attn_map=need_attn_map)

    # reproduce the reference's (quirky) reshape/permute sequence exactly
    out = out.reshape(h, t, e // h, b).transpose(2, 0, 1, 3)      # (dh, h, t, b)
    out = out.reshape(b, h, t, dh).transpose(0, 2, 1, 3).reshape(b, t, e)
    return out, attn


# --------------------------------------------------------------------------------------
# Residual blocks / full module
# --------------------------------------------------------------------------------------

def attention_block(x, p, input_mask, *, heads, bucket_size, n_hashes, rot_key,
                    return_attn, need_attn_map):
    out, attn = lsh_self_attention(x, p, input_mask, heads=heads,
                                   bucket_size=bucket_size, n_hashes=n_hashes,
                                   rot_key=rot_key, return_attn=return_attn,
                                   need_attn_map=need_attn_map)
    return x + out, attn


def ffn_block(x, p):
    b, t, e = x.shape
    y = pl_ffn(x.reshape(b * t, e), p["ln_g"], p["ln_b"],
               p["w1_t"], p["b1"], p["w2_t"], p["b2"])
    return y.reshape(b, t, e)


def grn_transformer_forward(x, params, *, n_cell, n_gene, bucket_size, heads,
                            n_hashes=4, return_attn=True):
    x = x.astype(F32)

    # --- row attention (over genes) ---
    t1 = x.shape[1]
    pad_len = math.ceil(t1 / (bucket_size * 2)) * (bucket_size * 2) - t1
    x = jnp.pad(x, ((0, 0), (0, pad_len), (0, 0)))
    mask1 = jnp.ones((x.shape[1],), F32)
    # torch quirk: `input_mask[-pad_len:] = 0` zeroes the whole mask when pad_len == 0
    mask1 = mask1.at[-pad_len:].set(0.0) if pad_len > 0 else jnp.zeros_like(mask1)
    x, attn = attention_block(x, params["attention"], mask1, heads=heads,
                              bucket_size=bucket_size, n_hashes=n_hashes,
                              rot_key=params["rot_key_row"], return_attn=return_attn,
                              need_attn_map=return_attn)
    x = x[:, :n_gene]
    x = jnp.swapaxes(x, 0, 1)

    # --- column attention (over cells); its attention map is discarded, so skip p ---
    t2 = x.shape[1]
    pad_len2 = math.ceil(t2 / (bucket_size * 2)) * (bucket_size * 2) - t2
    x = jnp.pad(x, ((0, 0), (0, pad_len2), (0, 0)))
    mask2 = jnp.ones((x.shape[1],), F32)
    mask2 = mask2.at[-pad_len2:].set(0.0) if pad_len2 > 0 else jnp.zeros_like(mask2)
    x, _ = attention_block(x, params["col_attention"], mask2, heads=heads,
                           bucket_size=bucket_size, n_hashes=n_hashes,
                           rot_key=params["rot_key_col"], return_attn=return_attn,
                           need_attn_map=False)
    x = jnp.swapaxes(x, 0, 1)[:n_cell]

    # --- feed-forward residual block (fully fused) ---
    x = ffn_block(x, params["ffn"])
    return x, attn


# --------------------------------------------------------------------------------------
# Deterministic parameter construction
# --------------------------------------------------------------------------------------

def init_params(key, embed, ffn_dim):
    ks = jax.random.split(key, 8)

    def w(k, out_dim, in_dim, scale=0.1):
        return jax.random.normal(k, (out_dim, in_dim), F32) * scale

    def attn_params(k1, k2):
        return {"ln_g": jnp.ones((embed,), F32), "ln_b": jnp.zeros((embed,), F32),
                "w_qk_t": w(k1, embed, embed).T, "w_v_t": w(k2, embed, embed).T}

    return {
        "attention": attn_params(ks[0], ks[1]),
        "col_attention": attn_params(ks[2], ks[3]),
        "ffn": {"ln_g": jnp.ones((embed,), F32), "ln_b": jnp.zeros((embed,), F32),
                "w1_t": w(ks[4], ffn_dim, embed).T, "b1": jnp.zeros((ffn_dim,), F32),
                "w2_t": w(ks[5], embed, ffn_dim).T, "b2": jnp.zeros((embed,), F32)},
        "rot_key_row": ks[6],
        "rot_key_col": ks[7],
    }


if __name__ == "__main__":
    EMBED, FFN_DIM, HEADS, BUCKET, N_HASHES = 32, 32, 4, 4, 4
    n_cell, n_gene = 4, 6

    key = jax.random.PRNGKey(0)
    k_x, k_p = jax.random.split(key)
    x = jax.random.normal(k_x, (n_cell, n_gene, EMBED), F32)
    params = init_params(k_p, EMBED, FFN_DIM)

    out, attn = grn_transformer_forward(
        x, params, n_cell=n_cell, n_gene=n_gene,
        bucket_size=BUCKET, heads=HEADS, n_hashes=N_HASHES, return_attn=True)
    jax.block_until_ready((out, attn))

    assert out.shape == (n_cell, n_gene, EMBED), out.shape
    assert attn.shape[0] == HEADS, attn.shape
    assert bool(jnp.all(jnp.isfinite(out))) and bool(jnp.all(jnp.isfinite(attn)))
    print("KERNEL_OK")
</pallas_src>

<mosaic_0001>
module attributes {stable_mosaic.version = 11 : i64} {
  func.func @_ln_proj_kernel(%arg0: i32, %arg1: memref<32x32xf32, #tpu.memory_space<vmem>>, %arg2: memref<1x32xf32, #tpu.memory_space<vmem>>, %arg3: memref<1x32xf32, #tpu.memory_space<vmem>>, %arg4: memref<32x32xbf16, #tpu.memory_space<vmem>>, %arg5: memref<32x32xbf16, #tpu.memory_space<vmem>>, %arg6: memref<32x32xf32, #tpu.memory_space<vmem>>, %arg7: memref<32x32xf32, #tpu.memory_space<vmem>>) attributes {dimension_semantics = [#tpu.dimension_semantics<parallel>], iteration_bounds = array<i64: 1>, scalar_prefetch = 0 : i64, scratch_operands = 0 : i64, tpu.core_type = #tpu.core_type<tc>, window_params = [{transform_indices = @transform_0, window_bounds = array<i64: 32, 32>}, {pipeline_mode = #tpu.pipeline_mode<synchronous>, transform_indices = @transform_1, window_bounds = array<i64: 1, 32>}, {pipeline_mode = #tpu.pipeline_mode<synchronous>, transform_indices = @transform_2, window_bounds = array<i64: 1, 32>}, {pipeline_mode = #tpu.pipeline_mode<synchronous>, transform_indices = @transform_3, window_bounds = array<i64: 32, 32>}, {pipeline_mode = #tpu.pipeline_mode<synchronous>, transform_indices = @transform_4, window_bounds = array<i64: 32, 32>}, {transform_indices = @transform_5, window_bounds = array<i64: 32, 32>}, {transform_indices = @transform_6, window_bounds = array<i64: 32, 32>}]} {
    %c0 = arith.constant 0 : index
    %c0_0 = arith.constant 0 : index
    %0 = vector.load %arg1[%c0, %c0_0] : memref<32x32xf32, #tpu.memory_space<vmem>>, vector<32x32xf32>
    %cst = arith.constant dense<0.000000e+00> : vector<32xf32>
    %1 = vector.multi_reduction <add>, %0, %cst [1] : vector<32x32xf32> to vector<32xf32>
    %2 = vector.shape_cast %1 : vector<32xf32> to vector<32x1xf32>
    %cst_1 = arith.constant 3.200000e+01 : f32
    %3 = vector.broadcast %cst_1 : f32 to vector<32x1xf32>
    %4 = arith.divf %2, %3 : vector<32x1xf32>
    %5 = vector.broadcast %4 : vector<32x1xf32> to vector<32x32xf32>
    %6 = arith.subf %0, %5 : vector<32x32xf32>
    %7 = arith.mulf %6, %6 : vector<32x32xf32>
    %cst_2 = arith.constant dense<0.000000e+00> : vector<32xf32>
    %8 = vector.multi_reduction <add>, %7, %cst_2 [1] : vector<32x32xf32> to vector<32xf32>
    %9 = vector.shape_cast %8 : vector<32xf32> to vector<32x1xf32>
    %cst_3 = arith.constant 3.200000e+01 : f32
    %10 = vector.broadcast %cst_3 : f32 to vector<32x1xf32>
    %11 = arith.divf %9, %10 : vector<32x1xf32>
    %12 = vector.broadcast %4 : vector<32x1xf32> to vector<32x32xf32>
    %13 = arith.subf %0, %12 : vector<32x32xf32>
    %cst_4 = arith.constant 9.99999996E-13 : f32
    %14 = vector.broadcast %cst_4 : f32 to vector<32x1xf32>
    %15 = arith.addf %11, %14 : vector<32x1xf32>
    %16 = math.sqrt %15 : vector<32x1xf32>
    %17 = vector.broadcast %16 : vector<32x1xf32> to vector<32x32xf32>
    %18 = arith.divf %13, %17 : vector<32x32xf32>
    %c0_5 = arith.constant 0 : index
    %c0_6 = arith.constant 0 : index
    %19 = vector.load %arg2[%c0_5, %c0_6] : memref<1x32xf32, #tpu.memory_space<vmem>>, vector<1x32xf32>
    %20 = vector.broadcast %19 : vector<1x32xf32> to vector<32x32xf32>
    %21 = arith.mulf %18, %20 : vector<32x32xf32>
    %c0_7 = arith.constant 0 : index
    %c0_8 = arith.constant 0 : index
    %22 = vector.load %arg3[%c0_7, %c0_8] : memref<1x32xf32, #tpu.memory_space<vmem>>, vector<1x32xf32>
    %23 = vector.broadcast %22 : vector<1x32xf32> to vector<32x32xf32>
    %24 = arith.addf %21, %23 : vector<32x32xf32>
    %25 = arith.truncf %24 : vector<32x32xf32> to vector<32x32xbf16>
    %c0_9 = arith.constant 0 : index
    %c0_10 = arith.constant 0 : index
    %26 = vector.load %arg4[%c0_9, %c0_10] : memref<32x32xbf16, #tpu.memory_space<vmem>>, vector<32x32xbf16>
    %cst_11 = arith.constant dense<0.000000e+00> : vector<32x32xf32>
    %27 = tpu.matmul %25, %26, %cst_11 {dimension_numbers = #tpu.dot_dimension_numbers<[1], [0], [0], [1], [0, 0, 1, 1], [], []>} : vector<32x32xbf16>, vector<32x32xbf16>, vector<32x32xf32> -> vector<32x32xf32>
    %c0_12 = arith.constant 0 : index
    %c0_13 = arith.constant 0 : index
    %28 = vector.load %arg6[%c0_12, %c0_13] : memref<32x32xf32, #tpu.memory_space<vmem>>, vector<32x32xf32>
    tpu.vector_store %arg6[%c0_12, %c0_13], %27 {strides = array<i32>} : memref<32x32xf32, #tpu.memory_space<vmem>>, vector<32x32xf32>,
    %c0_14 = arith.constant 0 : index
    %c0_15 = arith.constant 0 : index
    %29 = vector.load %arg5[%c0_14, %c0_15] : memref<32x32xbf16, #tpu.memory_space<vmem>>, vector<32x32xbf16>
    %cst_16 = arith.constant dense<0.000000e+00> : vector<32x32xf32>
    %30 = tpu.matmul %25, %29, %cst_16 {dimension_numbers = #tpu.dot_dimension_numbers<[1], [0], [0], [1], [0, 0, 1, 1], [], []>} : vector<32x32xbf16>, vector<32x32xbf16>, vector<32x32xf32> -> vector<32x32xf32>
    %c0_17 = arith.constant 0 : index
    %c0_18 = arith.constant 0 : index
    %31 = vector.load %arg7[%c0_17, %c0_18] : memref<32x32xf32, #tpu.memory_space<vmem>>, vector<32x32xf32>
    tpu.vector_store %arg7[%c0_17, %c0_18], %30 {strides = array<i32>} : memref<32x32xf32, #tpu.memory_space<vmem>>, vector<32x32xf32>,
    return
  }
  func.func @transform_0(%arg0: i32) -> (i32, i32) {
    %c0_i32 = arith.constant 0 : i32
    %c0_i32_0 = arith.constant 0 : i32
    return %arg0, %c0_i32 : i32, i32
  }
  func.func @transform_1(%arg0: i32) -> (i32, i32) {
    %c0_i32 = arith.constant 0 : i32
    %c0_i32_0 = arith.constant 0 : i32
    %c0_i32_1 = arith.constant 0 : i32
    return %c0_i32, %c0_i32_0 : i32, i32
  }
  func.func @transform_2(%arg0: i32) -> (i32, i32) {
    %c0_i32 = arith.constant 0 : i32
    %c0_i32_0 = arith.constant 0 : i32
    %c0_i32_1 = arith.constant 0 : i32
    return %c0_i32, %c0_i32_0 : i32, i32
  }
  func.func @transform_3(%arg0: i32) -> (i32, i32) {
    %c0_i32 = arith.constant 0 : i32
    %c0_i32_0 = arith.constant 0 : i32
    %c0_i32_1 = arith.constant 0 : i32
    return %c0_i32, %c0_i32_0 : i32, i32
  }
  func.func @transform_4(%arg0: i32) -> (i32, i32) {
    %c0_i32 = arith.constant 0 : i32
    %c0_i32_0 = arith.constant 0 : i32
    %c0_i32_1 = arith.constant 0 : i32
    return %c0_i32, %c0_i32_0 : i32, i32
  }
  func.func @transform_5(%arg0: i32) -> (i32, i32) {
    %c0_i32 = arith.constant 0 : i32
    %c0_i32_0 = arith.constant 0 : i32
    return %arg0, %c0_i32 : i32, i32
  }
  func.func @transform_6(%arg0: i32) -> (i32, i32) {
    %c0_i32 = arith.constant 0 : i32
    %c0_i32_0 = arith.constant 0 : i32
    return %arg0, %c0_i32 : i32, i32
  }
}

</mosaic_0001>

<llo_original>
// kernel: tpu_custom_call.1
$region0: #{tpu_custom_call.1}
  #allocation0 [shape = 'u32[]', space=smem, size = 0x4, offset = 0x4, fixed_abs, tag = 'smem constant byte address 0x4 - core index']
  #allocation1 [shape = 'u32[144,128]{1,0:T(1,128)}', space=vmem, size = 0x12000, scoped, tag = 'internal scratch']
  %s0 = inlined_call_operand.hbm [shape: f32[32,32], index: 0, kind: input, shape index: {}]
  %s1 = inlined_call_operand.vmem [shape: f32[1,32], index: 1, kind: input, shape index: {}]
  %s2 = inlined_call_operand.vmem [shape: f32[1,32], index: 2, kind: input, shape index: {}]
  %s3 = inlined_call_operand.hbm [shape: bf16[32,32], index: 3, kind: input, shape index: {}]
  %s4 = inlined_call_operand.hbm [shape: bf16[32,32], index: 4, kind: input, shape index: {}]
  %s5 = inlined_call_operand.hbm [shape: f32[32,32], index: 5, kind: output, shape index: {0}]
  %s6 = inlined_call_operand.hbm [shape: f32[32,32], index: 6, kind: output, shape index: {1}]
  %7 = xla_tuple %s5, %s6
  %s8 = sld [smem:[#allocation0]]
  $region50: #{tpu_custom_call.1} parent=0
    _
  %s10 = ssub.s32 1, %s8
  %s11 = scalar_select 0, %s10, %s8
  $region1: #{tpu_custom_call.1} parent=0
    #allocation2 [shape = 'u8[16384]{0}', space=vmem, size = 0x4000, scoped, tag = 'input window, operand 0, single buffered']
    #allocation3 [shape = 's32[1]{0}', space=sflag, size = 0x4, scoped, tag = 'scoped memory for tpu_custom_call.1']
    #allocation4 [shape = 's32[1]{0}', space=sflag, size = 0x4, scoped, tag = 'scoped memory for tpu_custom_call.1']
    #allocation5 [shape = 'u8[8192]{0}', space=vmem, size = 0x2000, scoped, tag = 'input window, operand 3, single buffered']
    #allocation6 [shape = 's32[1]{0}', space=sflag, size = 0x4, scoped, tag = 'scoped memory for tpu_custom_call.1']
    #allocation7 [shape = 'u8[8192]{0}', space=vmem, size = 0x2000, scoped, tag = 'input window, operand 4, single buffered']
    #allocation8 [shape = 'u8[16384]{0}', space=vmem, size = 0x4000, scoped, tag = 'output window, operand 0, single buffered']
    #allocation9 [shape = 'u8[16384]{0}', space=vmem, size = 0x4000, scoped, tag = 'output window, operand 1, single buffered']
    #allocation10 [shape = 's32[1]{0}', space=sflag, size = 0x4, scoped, tag = 'scoped memory for tpu_custom_call.1']
    %12 = vsyncpa [#allocation3], 0
    %13 = vsyncpa [#allocation6], 0
    %14 = vsyncpa [#allocation4], 0
    %15 = vsyncpa [#allocation10], 0
    // Predicated region
    $region2: #{tpu_custom_call.1} parent=1 // pred_check
      _
    $region3: #{tpu_custom_call.1} parent=1 // pred_check_branch
      %17 = sbr.rel (0) target = $region5
    $region4: #{tpu_custom_call.1} parent=1 // pred_region
      %s19 = ssub.s32 512, 512
      %20 = vsyncadd [#allocation3], %s19
      %s21 = sshll.u32 [#allocation2], 4
      %s22 = int_to_ptr.vmem [resolvable:$true] %s21
      %27 = dma.hbm_to_vmem [thread:$0]  %s0, 512, %s22, [#allocation3], 128, 128, 8
    $region5: #{tpu_custom_call.1} parent=1 // pred_fallthru
      _
    // Predicated region
    $region6: #{tpu_custom_call.1} parent=1 // pred_check
      _
    $region7: #{tpu_custom_call.1} parent=1 // pred_check_branch
      %29 = sbr.rel (0) target = $region9
    $region8: #{tpu_custom_call.1} parent=1 // pred_region
      _
    $region9: #{tpu_custom_call.1} parent=1 // pred_fallthru
      _
    // Predicated region
    $region10: #{tpu_custom_call.1} parent=1 // pred_check
      _
    $region11: #{tpu_custom_call.1} parent=1 // pred_check_branch
      %31 = sbr.rel (0) target = $region13
    $region12: #{tpu_custom_call.1} parent=1 // pred_region
      _
    $region13: #{tpu_custom_call.1} parent=1 // pred_fallthru
      _
    // Predicated region
    $region14: #{tpu_custom_call.1} parent=1 // pred_check
      _
    $region15: #{tpu_custom_call.1} parent=1 // pred_check_branch
      %33 = sbr.rel (0) target = $region17
    $region16: #{tpu_custom_call.1} parent=1 // pred_region
      %s35 = ssub.s32 256, 256
      %36 = vsyncadd [#allocation6], %s35
      %s37 = sshll.u32 [#allocation5], 4
      %s38 = int_to_ptr.vmem [resolvable:$true] %s37
      %43 = dma.hbm_to_vmem [thread:$0]  %s3, 256, %s38, [#allocation6], 64, 64, 4
    $region17: #{tpu_custom_call.1} parent=1 // pred_fallthru
      _
    // Predicated region
    $region18: #{tpu_custom_call.1} parent=1 // pred_check
      _
    $region19: #{tpu_custom_call.1} parent=1 // pred_check_branch
      %45 = sbr.rel (0) target = $region21
    $region20: #{tpu_custom_call.1} parent=1 // pred_region
      %s47 = ssub.s32 256, 256
      %48 = vsyncadd [#allocation6], %s47
      %s49 = sshll.u32 [#allocation7], 4
      %s50 = int_to_ptr.vmem [resolvable:$true] %s49
      %55 = dma.hbm_to_vmem [thread:$0]  %s4, 256, %s50, [#allocation6], 64, 64, 4
    $region21: #{tpu_custom_call.1} parent=1 // pred_fallthru
      _
    // Predicated region
    $region22: #{tpu_custom_call.1} parent=1 // pred_check
      _
    $region23: #{tpu_custom_call.1} parent=1 // pred_check_branch
      %57 = sbr.rel (0) target = $region25
    $region24: #{tpu_custom_call.1} parent=1 // pred_region
      %58 = dma.done [#allocation3], 512
    $region25: #{tpu_custom_call.1} parent=1 // pred_fallthru
      _
    // Predicated region
    $region26: #{tpu_custom_call.1} parent=1 // pred_check
      _
    $region27: #{tpu_custom_call.1} parent=1 // pred_check_branch
      %60 = sbr.rel (0) target = $region29
    $region28: #{tpu_custom_call.1} parent=1 // pred_region
      %61 = dma.done [#allocation6], 256
    $region29: #{tpu_custom_call.1} parent=1 // pred_fallthru
      _
    // Predicated region
    $region30: #{tpu_custom_call.1} parent=1 // pred_check
      _
    $region31: #{tpu_custom_call.1} parent=1 // pred_check_branch
      %63 = sbr.rel (0) target = $region33
    $region32: #{tpu_custom_call.1} parent=1 // pred_region
      %64 = dma.done [#allocation6], 256
    $region33: #{tpu_custom_call.1} parent=1 // pred_fallthru
      _
    %v66 = vld [vmem:[#allocation2] sm:$0xff]
    %v67 = vld [vmem:[#allocation2 + $0x8] sm:$0xff]
    %v68 = vld [vmem:[#allocation2 + $0x10] sm:$0xff]
    %v69 = vld [vmem:[#allocation2 + $0x18] sm:$0xff]
    %vm70 = vcmask 261120
    %v71 = vsel %vm70, %v66, 0.0
    %72 = vadd.xlane.f32.xlu0 %v71
    %v73 = vpop.xlane.xlu0 %72
    %v74 = vsel %vm70, %v67, 0.0
    %75 = vadd.xlane.f32.xlu0 %v74
    %v76 = vpop.xlane.xlu0 %75
    %v77 = vsel %vm70, %v68, 0.0
    %78 = vadd.xlane.f32.xlu0 %v77
    %v79 = vpop.xlane.xlu0 %78
    %v80 = vsel %vm70, %v69, 0.0
    %81 = vadd.xlane.f32.xlu0 %v80
    %v82 = vpop.xlane.xlu0 %81
    %v83 = vrcp.pop 32.0
    %v84 = vmul.f32 %v73, %v83
    %v85 = vmul.f32 %v76, %v83
    %v86 = vmul.f32 %v79, %v83
    %v87 = vmul.f32 %v82, %v83
    %v88 = vsub.f32 %v66, %v84
    %v89 = vsub.f32 %v67, %v85
    %v90 = vsub.f32 %v68, %v86
    %v91 = vsub.f32 %v69, %v87
    %v92 = vmul.f32 %v88, %v88
    %v93 = vmul.f32 %v89, %v89
    %v94 = vmul.f32 %v90, %v90
    %v95 = vmul.f32 %v91, %v91
    %v96 = vsel %vm70, %v92, 0.0
    %97 = vadd.xlane.f32.xlu0 %v96
    %v98 = vpop.xlane.xlu0 %97
    %v99 = vsel %vm70, %v93, 0.0
    %100 = vadd.xlane.f32.xlu0 %v99
    %v101 = vpop.xlane.xlu0 %100
    %v102 = vsel %vm70, %v94, 0.0
    %103 = vadd.xlane.f32.xlu0 %v102
    %v104 = vpop.xlane.xlu0 %103
    %v105 = vsel %vm70, %v95, 0.0
    %106 = vadd.xlane.f32.xlu0 %v105
    %v107 = vpop.xlane.xlu0 %106
    %v108 = vmul.f32 %v98, %v83
    %v109 = vmul.f32 %v101, %v83
    %v110 = vmul.f32 %v104, %v83
    %v111 = vmul.f32 %v107, %v83
    %v112 = vadd.f32 %v108, 1e-12
    %v113 = vadd.f32 %v109, 1e-12
    %v114 = vadd.f32 %v110, 1e-12
    %v115 = vadd.f32 %v111, 1e-12
    %v116 = vrsqrt.pop %v112
    %v117 = vmul.f32 %v112, %v116
    %vm118 = vcmp.eq.f32.partialorder %v112, inf
    %v119 = vsel %vm118, %v112, %v117
    %vm120 = vcmp.eq.f32.partialorder %v112, 0.0
    %v121 = vand.u32 %v112, 2147483648
    %v122 = vsel %vm120, %v121, %v119
    %v123 = vrsqrt.pop %v113
    %v124 = vmul.f32 %v113, %v123
    %vm125 = vcmp.eq.f32.partialorder %v113, inf
    %v126 = vsel %vm125, %v113, %v124
    %vm127 = vcmp.eq.f32.partialorder %v113, 0.0
    %v128 = vand.u32 %v113, 2147483648
    %v129 = vsel %vm127, %v128, %v126
    %v130 = vrsqrt.pop %v114
    %v131 = vmul.f32 %v114, %v130
    %vm132 = vcmp.eq.f32.partialorder %v114, inf
    %v133 = vsel %vm132, %v114, %v131
    %vm134 = vcmp.eq.f32.partialorder %v114, 0.0
    %v135 = vand.u32 %v114, 2147483648
    %v136 = vsel %vm134, %v135, %v133
    %v137 = vrsqrt.pop %v115
    %v138 = vmul.f32 %v115, %v137
    %vm139 = vcmp.eq.f32.partialorder %v115, inf
    %v140 = vsel %vm139, %v115, %v138
    %vm141 = vcmp.eq.f32.partialorder %v115, 0.0
    %v142 = vand.u32 %v115, 2147483648
    %v143 = vsel %vm141, %v142, %v140
    %v144 = vrcp.pop %v122
    %v145 = vmul.f32 %v88, %v144
    %v146 = vrcp.pop %v129
    %v147 = vmul.f32 %v89, %v146
    %v148 = vrcp.pop %v136
    %v149 = vmul.f32 %v90, %v148
    %v150 = vrcp.pop %v143
    %v151 = vmul.f32 %v91, %v150
    %v152 = vld [vmem:[%s1] sm:$0x1]
    %v154 = vlaneseq
    %v155 = vshrl.u32 %v154, 7
    %v156 = vsub.s32 0, %v155
    %v157 = vrot.slane %v152, %v156
    %v159 = vmul.f32 %v145, %v157
    %v160 = vmul.f32 %v147, %v157
    %v161 = vmul.f32 %v149, %v157
    %v162 = vmul.f32 %v151, %v157
    %v163 = vld [vmem:[%s2] sm:$0x1]
    %v165 = vlaneseq
    %v166 = vshrl.u32 %v165, 7
    %v167 = vsub.s32 0, %v166
    %v168 = vrot.slane %v163, %v167
    %v170 = vadd.f32 %v159, %v168
    %v171 = vadd.f32 %v160, %v168
    %v172 = vadd.f32 %v161, %v168
    %v173 = vadd.f32 %v162, %v168
    %v174 = vpack.c.bf16 %v171, %v170
    %v175 = vpack.c.bf16 %v173, %v172
    %v176 = vld [vmem:[#allocation5] sm:$0xf]
    %v177 = vld [vmem:[#allocation5 + $0x4] sm:$0xf]
    %v178 = vld [vmem:[#allocation5 + $0x8] sm:$0xf]
    %v179 = vld [vmem:[#allocation5 + $0xc] sm:$0xf]
    %v184 = vunpack.c.l.b16 %v176
    %v185 = vunpack.c.l.b16 %v177
    %v186 = vunpack.c.l.b16 %v178
    %v187 = vunpack.c.l.b16 %v179
    %v188 = vpack.c.b16 %v185, %v184
    %v189 = vpack.c.b16 %v187, %v186
    %v193 = vsel %vm70, %v174, 0
    %v196 = vsel %vm70, %v175, 0
    %198 = vmatprep.subr.bf16.mxu0 0
    %199 = vmatpush1.bf16.msra.mxu0 0
    %200 = vmatprep.subr.bf16.mxu0 0
    %201 = vmatpush1.bf16.msra.mxu0 0
    %202 = vmatprep.subr.bf16.mxu0 0
    %203 = vmatpush1.bf16.msra.mxu0 0
    %204 = vmatprep.subr.bf16.mxu0 0
    %205 = vmatpush1.bf16.msra.mxu0 0
    %206 = vmatprep.subr.bf16.mxu0 0
    %207 = vmatpush1.bf16.msra.mxu0 0
    %208 = vmatprep.subr.bf16.mxu0 0
    %209 = vmatpush1.bf16.msra.mxu0 0
    %210 = vmatprep.subr.bf16.mxu0 0
    %211 = vmatpush1.bf16.msra.mxu0 %v189
    %212 = vmatprep.subr.bf16.mxu0 0
    %213 = vmatpush1.bf16.msra.mxu0 %v188
    %214 = vmatprep.subr.bf16.mxu0 0
    %215 = vmatpush2.bf16.msra.mxu0 0
    %216 = vmatprep.subr.bf16.mxu0 0
    %217 = vmatpush2.bf16.msra.mxu0 0
    %218 = vmatprep.subr.bf16.mxu0 0
    %219 = vmatpush2.bf16.msra.mxu0 0
    %220 = vmatprep.subr.bf16.mxu0 0
    %221 = vmatpush2.bf16.msra.mxu0 0
    %222 = vmatprep.subr.bf16.mxu0 0
    %223 = vmatpush2.bf16.msra.mxu0 0
    %224 = vmatprep.subr.bf16.mxu0 0
    %225 = vmatpush2.bf16.msra.mxu0 0
    %226 = vmatprep.subr.bf16.mxu0 0
    %227 = vmatpush2.bf16.msra.mxu0 0
    %228 = vmatprep.subr.bf16.mxu0 0
    %229 = vmatpush2.bf16.msra.mxu0 0
    %230 = vmatprep.mubr.bf16.mxu0 0
    %231 = vmatmul.mubr.bf16.gmra.mxu0 %v193
    %v232 = vpop.f32.mrf.mxu0
    %v233 = vadd.f32 0.0, %v232
    %v234 = vpop.f32.mrf.mxu0
    %v235 = vpop.f32.mrf.mxu0
    %v236 = vadd.f32 0.0, %v235
    %v237 = vpop.f32.mrf.mxu0
    %238 = vmatprep.mubr.bf16.mxu0 0
    %239 = vmatmul.mubr.bf16.gmra.mxu0 %v196
    %v240 = vpop.f32.mrf.mxu0
    %v241 = vadd.f32 0.0, %v240
    %v242 = vpop.f32.mrf.mxu0
    %v243 = vpop.f32.mrf.mxu0
    %v244 = vadd.f32 0.0, %v243
    %v245 = vpop.f32.mrf.mxu0
    %246 = vdwg.mxu0
    %247 = vst.msk [vmem:[#allocation8] sm:$0xff] %vm70, %v233
    %248 = vst.msk [vmem:[#allocation8 + $0x8] sm:$0xff] %vm70, %v236
    %249 = vst.msk [vmem:[#allocation8 + $0x10] sm:$0xff] %vm70, %v241
    %250 = vst.msk [vmem:[#allocation8 + $0x18] sm:$0xff] %vm70, %v244
    %v251 = vld [vmem:[#allocation7] sm:$0xf]
    %v252 = vld [vmem:[#allocation7 + $0x4] sm:$0xf]
    %v253 = vld [vmem:[#allocation7 + $0x8] sm:$0xf]
    %v254 = vld [vmem:[#allocation7 + $0xc] sm:$0xf]
    %v259 = vunpack.c.l.b16 %v251
    %v260 = vunpack.c.l.b16 %v252
    %v261 = vunpack.c.l.b16 %v253
    %v262 = vunpack.c.l.b16 %v254
    %v263 = vpack.c.b16 %v260, %v259
    %v264 = vpack.c.b16 %v262, %v261
    %267 = vmatprep.subr.bf16.mxu0 0
    %268 = vmatpush1.bf16.msra.mxu0 0
    %269 = vmatprep.subr.bf16.mxu0 0
    %270 = vmatpush1.bf16.msra.mxu0 0
    %271 = vmatprep.subr.bf16.mxu0 0
    %272 = vmatpush1.bf16.msra.mxu0 0
    %273 = vmatprep.subr.bf16.mxu0 0
    %274 = vmatpush1.bf16.msra.mxu0 0
    %275 = vmatprep.subr.bf16.mxu0 0
    %276 = vmatpush1.bf16.msra.mxu0 0
    %277 = vmatprep.subr.bf16.mxu0 0
    %278 = vmatpush1.bf16.msra.mxu0 0
    %279 = vmatprep.subr.bf16.mxu0 0
    %280 = vmatpush1.bf16.msra.mxu0 %v264
    %281 = vmatprep.subr.bf16.mxu0 0
    %282 = vmatpush1.bf16.msra.mxu0 %v263
    %283 = vmatprep.subr.bf16.mxu0 0
    %284 = vmatpush2.bf16.msra.mxu0 0
    %285 = vmatprep.subr.bf16.mxu0 0
    %286 = vmatpush2.bf16.msra.mxu0 0
    %287 = vmatprep.subr.bf16.mxu0 0
    %288 = vmatpush2.bf16.msra.mxu0 0
    %289 = vmatprep.subr.bf16.mxu0 0
    %290 = vmatpush2.bf16.msra.mxu0 0
    %291 = vmatprep.subr.bf16.mxu0 0
    %292 = vmatpush2.bf16.msra.mxu0 0
    %293 = vmatprep.subr.bf16.mxu0 0
    %294 = vmatpush2.bf16.msra.mxu0 0
    %295 = vmatprep.subr.bf16.mxu0 0
    %296 = vmatpush2.bf16.msra.mxu0 0
    %297 = vmatprep.subr.bf16.mxu0 0
    %298 = vmatpush2.bf16.msra.mxu0 0
    %299 = vmatprep.mubr.bf16.mxu0 0
    %300 = vmatmul.mubr.bf16.gmra.mxu0 %v193
    %v301 = vpop.f32.mrf.mxu0
    %v302 = vadd.f32 0.0, %v301
    %v303 = vpop.f32.mrf.mxu0
    %v304 = vpop.f32.mrf.mxu0
    %v305 = vadd.f32 0.0, %v304
    %v306 = vpop.f32.mrf.mxu0
    %307 = vmatprep.mubr.bf16.mxu0 0
    %308 = vmatmul.mubr.bf16.gmra.mxu0 %v196
    %v309 = vpop.f32.mrf.mxu0
    %v310 = vadd.f32 0.0, %v309
    %v311 = vpop.f32.mrf.mxu0
    %v312 = vpop.f32.mrf.mxu0
    %v313 = vadd.f32 0.0, %v312
    %v314 = vpop.f32.mrf.mxu0
    %315 = vdwg.mxu0
    %316 = vst.msk [vmem:[#allocation9] sm:$0xff] %vm70, %v302
    %317 = vst.msk [vmem:[#allocation9 + $0x8] sm:$0xff] %vm70, %v305
    %318 = vst.msk [vmem:[#allocation9 + $0x10] sm:$0xff] %vm70, %v310
    %319 = vst.msk [vmem:[#allocation9 + $0x18] sm:$0xff] %vm70, %v313
    // Predicated region
    $region34: #{tpu_custom_call.1} parent=1 // pred_check
      _
    $region35: #{tpu_custom_call.1} parent=1 // pred_check_branch
      %321 = sbr.rel (0) target = $region37
    $region36: #{tpu_custom_call.1} parent=1 // pred_region
      %s323 = ssub.s32 512, 512
      %324 = vsyncadd [#allocation4], %s323
      %s325 = sshll.u32 [#allocation8], 4
      %s326 = int_to_ptr.vmem [resolvable:$true] %s325
      %331 = dma.vmem_to_hbm [thread:$0]  %s326, 512, %s5, [#allocation4], 128, 128, 8
    $region37: #{tpu_custom_call.1} parent=1 // pred_fallthru
      _
    // Predicated region
    $region38: #{tpu_custom_call.1} parent=1 // pred_check
      _
    $region39: #{tpu_custom_call.1} parent=1 // pred_check_branch
      %333 = sbr.rel (0) target = $region41
    $region40: #{tpu_custom_call.1} parent=1 // pred_region
      %s335 = ssub.s32 512, 512
      %336 = vsyncadd [#allocation10], %s335
      %s337 = sshll.u32 [#allocation9], 4
      %s338 = int_to_ptr.vmem [resolvable:$true] %s337
      %343 = dma.vmem_to_hbm [thread:$0]  %s338, 512, %s6, [#allocation10], 128, 128, 8
    $region41: #{tpu_custom_call.1} parent=1 // pred_fallthru
      _
    // Predicated region
    $region42: #{tpu_custom_call.1} parent=1 // pred_check
      _
    $region43: #{tpu_custom_call.1} parent=1 // pred_check_branch
      %345 = sbr.rel (0) target = $region45
    $region44: #{tpu_custom_call.1} parent=1 // pred_region
      %346 = dma.done [#allocation4], 512
    $region45: #{tpu_custom_call.1} parent=1 // pred_fallthru
      _
    // Predicated region
    $region46: #{tpu_custom_call.1} parent=1 // pred_check
      _
    $region47: #{tpu_custom_call.1} parent=1 // pred_check_branch
      %348 = sbr.rel (0) target = $region49
    $region48: #{tpu_custom_call.1} parent=1 // pred_region
      %349 = dma.done [#allocation10], 512
    $region49: #{tpu_custom_call.1} parent=1 // pred_fallthru
      _
    %350 = vsyncpa [#allocation3], 1
    %351 = vsyncpa [#allocation6], 1
    %352 = vsyncpa [#allocation4], 1
    %353 = vsyncpa [#allocation10], 1

</llo_original>
